<compile_context>
chip_gen: v6e
topology: v6e:2x2x1
jax: 0.10.0
libtpu: 0.0.40
codegen_flags: <defaults>
</compile_context>

<pallas_src>
import functools

import jax
import jax.numpy as jnp
from jax.experimental import pallas as pl
from jax.experimental.pallas import tpu as pltpu


def _attention_branch_kernel(p_ref, w1_ref, wa_ref, ba_ref, o_ref, *, cin, nb):
    """One batch element per grid step.

    p_ref : (1, K*K*Cin+1, HW) im2col patches, last row = ones (bias fold).
    w1_ref: (Cin+1, K*K*Cin+1) fused [preprocess ; branch-sum] weight + bias col.
    wa_ref: (Cin, nb) 1x1 attention weights (SMEM).
    ba_ref: (nb,)     1x1 attention bias    (SMEM).
    o_ref : (1, nb, HW) output, spatial on lanes.
    """
    p = p_ref[0]                                             # (KKC+1, HW)

    # Single fused MXU matmul: rows 0..Cin-1 = preprocess conv (+bias), row Cin
    # = sum over all branch output channels (+ summed branch biases).
    fused = jnp.dot(w1_ref[...], p, preferred_element_type=jnp.float32)
    pre = jnp.tanh(fused[:cin, :])                           # (Cin, HW)
    branch_sum = fused[cin:cin + 1, :]                       # (1, HW)

    # 1x1 attention conv as unrolled VPU multiply-adds (Cin, nb are tiny).
    rows = []
    for k in range(nb):
        att_k = wa_ref[0, k] * pre[0:1, :]
        for c in range(1, cin):
            att_k = att_k + wa_ref[c, k] * pre[c:c + 1, :]
        rows.append(att_k + ba_ref[k])
    att = jnp.concatenate(rows, axis=0)                      # (nb, HW)

    o_ref[0] = (att * branch_sum).astype(o_ref.dtype)


def attention_branch_forward(x_nchw, wb, bb, wp, bp, wa, ba):
    """x_nchw: [B, Cin, H, W]; wb: [nb, K, K, Cin, Cb] (HWIO per branch);
    bb: [nb, Cb]; wp: [K, K, Cin, Cin]; bp: [Cin]; wa: [Cin, nb]; ba: [nb].
    Returns NCHW output [B, nb, H-K+1, W-K+1]."""
    B, Cin, H, W = x_nchw.shape
    nb, K, _, _, Cb = wb.shape
    Hout, Wout = H - K + 1, W - K + 1
    HW = Hout * Wout
    KKC = K * K * Cin

    # --- wrapper-side im2col, transposed: rows ordered (dy, dx, cin), spatial
    # flattened onto the lane axis. Last row of ones folds the biases in.
    taps = [x_nchw[:, :, dy:dy + Hout, dx:dx + Wout].reshape(B, Cin, HW)
            for dy in range(K) for dx in range(K)]
    ones = jnp.ones((B, 1, HW), x_nchw.dtype)
    patches = jnp.concatenate(taps + [ones], axis=1)          # (B, KKC+1, HW)

    # --- fused weight prep (exact by linearity of the channel sum) ---
    w_sum = wb.reshape(nb, KKC, Cb).sum(axis=(0, 2))          # (KKC,)
    b_sum = bb.sum().reshape(1, 1)
    wp_flat = wp.reshape(KKC, Cin)                            # rows=(dy,dx,cin)
    w1_top = jnp.concatenate([wp_flat.T, bp[:, None]], axis=1)    # (Cin, KKC+1)
    w1_bot = jnp.concatenate([w_sum[None, :], b_sum], axis=1)     # (1,   KKC+1)
    w1 = jnp.concatenate([w1_top, w1_bot], axis=0)                # (Cin+1, KKC+1)

    kernel = functools.partial(_attention_branch_kernel, cin=Cin, nb=nb)

    out = pl.pallas_call(
        kernel,
        out_shape=jax.ShapeDtypeStruct((B, nb, HW), x_nchw.dtype),
        grid_spec=pltpu.PrefetchScalarGridSpec(
            num_scalar_prefetch=0,
            grid=(B,),
            in_specs=[
                pl.BlockSpec((1, KKC + 1, HW), lambda b: (b, 0, 0)),
                pl.BlockSpec((Cin + 1, KKC + 1), lambda b: (0, 0)),
                pl.BlockSpec(memory_space=pltpu.MemorySpace.SMEM),   # wa
                pl.BlockSpec(memory_space=pltpu.MemorySpace.SMEM),   # ba
            ],
            out_specs=pl.BlockSpec((1, nb, HW), lambda b: (b, 0, 0)),
        ),
        compiler_params=pltpu.CompilerParams(
            dimension_semantics=("parallel",)),
    )(patches, w1, wa, ba)

    return out.reshape(B, nb, Hout, Wout)                     # already NCHW order


def _reference(x_nchw, wb, bb, wp, bp, wa, ba):
    """Plain-JAX reference mirroring the PyTorch forward (NHWC convs)."""
    x = jnp.transpose(x_nchw, (0, 2, 3, 1))
    nb = wb.shape[0]

    def conv_valid(xi, w_hwio, bias):
        y = jax.lax.conv_general_dilated(
            xi, w_hwio, (1, 1), 'VALID',
            dimension_numbers=('NHWC', 'HWIO', 'NHWC'))
        return y + bias

    branches = jnp.concatenate(
        [conv_valid(x, wb[i], bb[i]) for i in range(nb)], axis=-1)  # [B,Ho,Wo,nb*Cb]
    pre = jnp.tanh(conv_valid(x, wp, bp))                           # [B,Ho,Wo,Cin]
    att = jnp.einsum('bhwc,ck->bhwk', pre, wa) + ba                 # [B,Ho,Wo,nb]
    out = att * jnp.sum(branches, axis=-1, keepdims=True)
    return jnp.transpose(out, (0, 3, 1, 2))


if __name__ == "__main__":
    # Small deterministic setup: B=2, Cin=4, H=W=16, 3 branches of Conv2d(4,4,3).
    B, Cin, H, W = 2, 4, 16, 16
    n_branches, Cb, K = 3, 4, 3

    key = jax.random.PRNGKey(0)
    ks = jax.random.split(key, 8)
    x = jax.random.normal(ks[0], (B, Cin, H, W), jnp.float32)
    wb = 0.1 * jax.random.normal(ks[1], (n_branches, K, K, Cin, Cb), jnp.float32)
    bb = 0.1 * jax.random.normal(ks[2], (n_branches, Cb), jnp.float32)
    wp = 0.1 * jax.random.normal(ks[3], (K, K, Cin, Cin), jnp.float32)
    bp = 0.1 * jax.random.normal(ks[4], (Cin,), jnp.float32)
    wa = 0.1 * jax.random.normal(ks[5], (Cin, n_branches), jnp.float32)
    ba = 0.1 * jax.random.normal(ks[6], (n_branches,), jnp.float32)

    out = attention_branch_forward(x, wb, bb, wp, bp, wa, ba)
    out = jax.block_until_ready(out)

    ref = _reference(x, wb, bb, wp, bp, wa, ba)
    assert out.shape == (B, n_branches, H - K + 1, W - K + 1), out.shape
    assert jnp.allclose(out, ref, rtol=5e-3, atol=5e-3), \
        float(jnp.max(jnp.abs(out - ref)))

    print("KERNEL_OK")
</pallas_src>

<mosaic_0001>
module attributes {stable_mosaic.version = 11 : i64} {
  func.func @_attention_branch_kernel(%arg0: i32, %arg1: memref<1x37x196xf32, #tpu.memory_space<vmem>>, %arg2: memref<5x37xf32, #tpu.memory_space<vmem>>, %arg3: memref<4x3xf32, #tpu.memory_space<smem>>, %arg4: memref<3xf32, #tpu.memory_space<smem>>, %arg5: memref<1x3x196xf32, #tpu.memory_space<vmem>>) attributes {dimension_semantics = [#tpu.dimension_semantics<parallel>], iteration_bounds = array<i64: 2>, scalar_prefetch = 0 : i64, scratch_operands = 0 : i64, tpu.core_type = #tpu.core_type<tc>, window_params = [{transform_indices = @transform_0, window_bounds = array<i64: 1, 37, 196>}, {pipeline_mode = #tpu.pipeline_mode<synchronous>, transform_indices = @transform_1, window_bounds = array<i64: 5, 37>}, {transform_indices = @transform_2, window_bounds = array<i64: 4, 3>}, {transform_indices = @transform_3, window_bounds = array<i64: 3>}, {transform_indices = @transform_4, window_bounds = array<i64: 1, 3, 196>}]} {
    %c0 = arith.constant 0 : index
    %c0_0 = arith.constant 0 : index
    %c0_1 = arith.constant 0 : index
    %0 = vector.load %arg1[%c0, %c0_0, %c0_1] : memref<1x37x196xf32, #tpu.memory_space<vmem>>, vector<1x37x196xf32>
    %1 = vector.shape_cast %0 : vector<1x37x196xf32> to vector<37x196xf32>
    %c0_2 = arith.constant 0 : index
    %c0_3 = arith.constant 0 : index
    %2 = vector.load %arg2[%c0_2, %c0_3] : memref<5x37xf32, #tpu.memory_space<vmem>>, vector<5x37xf32>
    %cst = arith.constant dense<0.000000e+00> : vector<5x196xf32>
    %3 = tpu.matmul %2, %1, %cst {dimension_numbers = #tpu.dot_dimension_numbers<[1], [0], [0], [1], [0, 0, 1, 1], [], []>} : vector<5x37xf32>, vector<37x196xf32>, vector<5x196xf32> -> vector<5x196xf32>
    %4 = vector.extract_strided_slice %3 {offsets = [0, 0], sizes = [4, 196], strides = [1, 1]} : vector<5x196xf32> to vector<4x196xf32>
    %5 = math.tanh %4 : vector<4x196xf32>
    %6 = vector.extract_strided_slice %3 {offsets = [4, 0], sizes = [1, 196], strides = [1, 1]} : vector<5x196xf32> to vector<1x196xf32>
    %c0_4 = arith.constant 0 : index
    %c0_5 = arith.constant 0 : index
    %7 = memref.load %arg3[%c0_4, %c0_5] : memref<4x3xf32, #tpu.memory_space<smem>>
    %8 = vector.extract_strided_slice %5 {offsets = [0, 0], sizes = [1, 196], strides = [1, 1]} : vector<4x196xf32> to vector<1x196xf32>
    %9 = vector.broadcast %7 : f32 to vector<1x196xf32>
    %10 = arith.mulf %9, %8 : vector<1x196xf32>
    %c1 = arith.constant 1 : index
    %c0_6 = arith.constant 0 : index
    %11 = memref.load %arg3[%c1, %c0_6] : memref<4x3xf32, #tpu.memory_space<smem>>
    %12 = vector.extract_strided_slice %5 {offsets = [1, 0], sizes = [1, 196], strides = [1, 1]} : vector<4x196xf32> to vector<1x196xf32>
    %13 = vector.broadcast %11 : f32 to vector<1x196xf32>
    %14 = arith.mulf %13, %12 : vector<1x196xf32>
    %15 = arith.addf %10, %14 : vector<1x196xf32>
    %c2 = arith.constant 2 : index
    %c0_7 = arith.constant 0 : index
    %16 = memref.load %arg3[%c2, %c0_7] : memref<4x3xf32, #tpu.memory_space<smem>>
    %17 = vector.extract_strided_slice %5 {offsets = [2, 0], sizes = [1, 196], strides = [1, 1]} : vector<4x196xf32> to vector<1x196xf32>
    %18 = vector.broadcast %16 : f32 to vector<1x196xf32>
    %19 = arith.mulf %18, %17 : vector<1x196xf32>
    %20 = arith.addf %15, %19 : vector<1x196xf32>
    %c3 = arith.constant 3 : index
    %c0_8 = arith.constant 0 : index
    %21 = memref.load %arg3[%c3, %c0_8] : memref<4x3xf32, #tpu.memory_space<smem>>
    %22 = vector.extract_strided_slice %5 {offsets = [3, 0], sizes = [1, 196], strides = [1, 1]} : vector<4x196xf32> to vector<1x196xf32>
    %23 = vector.broadcast %21 : f32 to vector<1x196xf32>
    %24 = arith.mulf %23, %22 : vector<1x196xf32>
    %25 = arith.addf %20, %24 : vector<1x196xf32>
    %c0_9 = arith.constant 0 : index
    %26 = memref.load %arg4[%c0_9] : memref<3xf32, #tpu.memory_space<smem>>
    %27 = vector.broadcast %26 : f32 to vector<1x196xf32>
    %28 = arith.addf %25, %27 : vector<1x196xf32>
    %c0_10 = arith.constant 0 : index
    %c1_11 = arith.constant 1 : index
    %29 = memref.load %arg3[%c0_10, %c1_11] : memref<4x3xf32, #tpu.memory_space<smem>>
    %30 = vector.extract_strided_slice %5 {offsets = [0, 0], sizes = [1, 196], strides = [1, 1]} : vector<4x196xf32> to vector<1x196xf32>
    %31 = vector.broadcast %29 : f32 to vector<1x196xf32>
    %32 = arith.mulf %31, %30 : vector<1x196xf32>
    %c1_12 = arith.constant 1 : index
    %c1_13 = arith.constant 1 : index
    %33 = memref.load %arg3[%c1_12, %c1_13] : memref<4x3xf32, #tpu.memory_space<smem>>
    %34 = vector.extract_strided_slice %5 {offsets = [1, 0], sizes = [1, 196], strides = [1, 1]} : vector<4x196xf32> to vector<1x196xf32>
    %35 = vector.broadcast %33 : f32 to vector<1x196xf32>
    %36 = arith.mulf %35, %34 : vector<1x196xf32>
    %37 = arith.addf %32, %36 : vector<1x196xf32>
    %c2_14 = arith.constant 2 : index
    %c1_15 = arith.constant 1 : index
    %38 = memref.load %arg3[%c2_14, %c1_15] : memref<4x3xf32, #tpu.memory_space<smem>>
    %39 = vector.extract_strided_slice %5 {offsets = [2, 0], sizes = [1, 196], strides = [1, 1]} : vector<4x196xf32> to vector<1x196xf32>
    %40 = vector.broadcast %38 : f32 to vector<1x196xf32>
    %41 = arith.mulf %40, %39 : vector<1x196xf32>
    %42 = arith.addf %37, %41 : vector<1x196xf32>
    %c3_16 = arith.constant 3 : index
    %c1_17 = arith.constant 1 : index
    %43 = memref.load %arg3[%c3_16, %c1_17] : memref<4x3xf32, #tpu.memory_space<smem>>
    %44 = vector.extract_strided_slice %5 {offsets = [3, 0], sizes = [1, 196], strides = [1, 1]} : vector<4x196xf32> to vector<1x196xf32>
    %45 = vector.broadcast %43 : f32 to vector<1x196xf32>
    %46 = arith.mulf %45, %44 : vector<1x196xf32>
    %47 = arith.addf %42, %46 : vector<1x196xf32>
    %c1_18 = arith.constant 1 : index
    %48 = memref.load %arg4[%c1_18] : memref<3xf32, #tpu.memory_space<smem>>
    %49 = vector.broadcast %48 : f32 to vector<1x196xf32>
    %50 = arith.addf %47, %49 : vector<1x196xf32>
    %c0_19 = arith.constant 0 : index
    %c2_20 = arith.constant 2 : index
    %51 = memref.load %arg3[%c0_19, %c2_20] : memref<4x3xf32, #tpu.memory_space<smem>>
    %52 = vector.extract_strided_slice %5 {offsets = [0, 0], sizes = [1, 196], strides = [1, 1]} : vector<4x196xf32> to vector<1x196xf32>
    %53 = vector.broadcast %51 : f32 to vector<1x196xf32>
    %54 = arith.mulf %53, %52 : vector<1x196xf32>
    %c1_21 = arith.constant 1 : index
    %c2_22 = arith.constant 2 : index
    %55 = memref.load %arg3[%c1_21, %c2_22] : memref<4x3xf32, #tpu.memory_space<smem>>
    %56 = vector.extract_strided_slice %5 {offsets = [1, 0], sizes = [1, 196], strides = [1, 1]} : vector<4x196xf32> to vector<1x196xf32>
    %57 = vector.broadcast %55 : f32 to vector<1x196xf32>
    %58 = arith.mulf %57, %56 : vector<1x196xf32>
    %59 = arith.addf %54, %58 : vector<1x196xf32>
    %c2_23 = arith.constant 2 : index
    %c2_24 = arith.constant 2 : index
    %60 = memref.load %arg3[%c2_23, %c2_24] : memref<4x3xf32, #tpu.memory_space<smem>>
    %61 = vector.extract_strided_slice %5 {offsets = [2, 0], sizes = [1, 196], strides = [1, 1]} : vector<4x196xf32> to vector<1x196xf32>
    %62 = vector.broadcast %60 : f32 to vector<1x196xf32>
    %63 = arith.mulf %62, %61 : vector<1x196xf32>
    %64 = arith.addf %59, %63 : vector<1x196xf32>
    %c3_25 = arith.constant 3 : index
    %c2_26 = arith.constant 2 : index
    %65 = memref.load %arg3[%c3_25, %c2_26] : memref<4x3xf32, #tpu.memory_space<smem>>
    %66 = vector.extract_strided_slice %5 {offsets = [3, 0], sizes = [1, 196], strides = [1, 1]} : vector<4x196xf32> to vector<1x196xf32>
    %67 = vector.broadcast %65 : f32 to vector<1x196xf32>
    %68 = arith.mulf %67, %66 : vector<1x196xf32>
    %69 = arith.addf %64, %68 : vector<1x196xf32>
    %c2_27 = arith.constant 2 : index
    %70 = memref.load %arg4[%c2_27] : memref<3xf32, #tpu.memory_space<smem>>
    %71 = vector.broadcast %70 : f32 to vector<1x196xf32>
    %72 = arith.addf %69, %71 : vector<1x196xf32>
    %73 = tpu.concatenate %28, %50, %72 in 0 : vector<1x196xf32>, vector<1x196xf32>, vector<1x196xf32> -> vector<3x196xf32>
    %74 = vector.broadcast %6 : vector<1x196xf32> to vector<3x196xf32>
    %75 = arith.mulf %73, %74 : vector<3x196xf32>
    %c0_28 = arith.constant 0 : index
    %c0_29 = arith.constant 0 : index
    %c0_30 = arith.constant 0 : index
    %76 = vector.load %arg5[%c0_28, %c0_29, %c0_30] : memref<1x3x196xf32, #tpu.memory_space<vmem>>, vector<1x3x196xf32>
    %77 = vector.shape_cast %76 : vector<1x3x196xf32> to vector<3x196xf32>
    %78 = vector.shape_cast %75 : vector<3x196xf32> to vector<1x3x196xf32>
    tpu.vector_store %arg5[%c0_28, %c0_29, %c0_30], %78 {strides = array<i32>} : memref<1x3x196xf32, #tpu.memory_space<vmem>>, vector<1x3x196xf32>,
    return
  }
  func.func @transform_0(%arg0: i32) -> (i32, i32, i32) {
    %c0_i32 = arith.constant 0 : i32
    %c0_i32_0 = arith.constant 0 : i32
    %c0_i32_1 = arith.constant 0 : i32
    return %arg0, %c0_i32, %c0_i32_0 : i32, i32, i32
  }
  func.func @transform_1(%arg0: i32) -> (i32, i32) {
    %c0_i32 = arith.constant 0 : i32
    %c0_i32_0 = arith.constant 0 : i32
    %c0_i32_1 = arith.constant 0 : i32
    return %c0_i32, %c0_i32_0 : i32, i32
  }
  func.func @transform_2(%arg0: i32) -> (i32, i32) {
    %c0_i32 = arith.constant 0 : i32
    %c0_i32_0 = arith.constant 0 : i32
    %c0_i32_1 = arith.constant 0 : i32
    return %c0_i32, %c0_i32_0 : i32, i32
  }
  func.func @transform_3(%arg0: i32) -> i32 {
    %c0_i32 = arith.constant 0 : i32
    %c0_i32_0 = arith.constant 0 : i32
    return %c0_i32 : i32
  }
  func.func @transform_4(%arg0: i32) -> (i32, i32, i32) {
    %c0_i32 = arith.constant 0 : i32
    %c0_i32_0 = arith.constant 0 : i32
    %c0_i32_1 = arith.constant 0 : i32
    return %arg0, %c0_i32, %c0_i32_0 : i32, i32, i32
  }
}

</mosaic_0001>

<llo_original>
// kernel: tpu_custom_call.1
$region0: #{tpu_custom_call.1}
  #allocation0 [shape = 'u32[]', space=smem, size = 0x4, offset = 0x4, fixed_abs, tag = 'smem constant byte address 0x4 - core index']
  #allocation1 [shape = 'u32[144,128]{1,0:T(1,128)}', space=vmem, size = 0x12000, scoped, tag = 'internal scratch']
  %s0 = inlined_call_operand.vmem [shape: f32[2,37,196], index: 0, kind: input, shape index: {}]
  %s1 = inlined_call_operand.vmem [shape: f32[5,37], index: 1, kind: input, shape index: {}]
  %s2 = inlined_call_operand.vmem [shape: f32[4,3], index: 2, kind: input, shape index: {}]
  %s3 = inlined_call_operand.vmem [shape: f32[3], index: 3, kind: input, shape index: {}]
  %s4 = inlined_call_operand.vmem [shape: f32[2,3,196], index: 4, kind: output, shape index: {}]
  %s5 = sld [smem:[#allocation0]]
  $region57: #{tpu_custom_call.1} parent=0
    _
  %s7 = ssub.s32 1, %s5
  %s8 = scalar_select 0, %s7, %s5
  $region1: #{tpu_custom_call.1} parent=0
    #allocation2 [shape = 'u8[2048]{0}', space=smem, size = 0x800, scoped, tag = 'input window, operand 2, single buffered']
    #allocation3 [shape = 's32[2]{0}', space=sflag, size = 0x8, scoped, tag = 'scoped memory for tpu_custom_call.1']
    #allocation4 [shape = 'u8[512]{0}', space=smem, size = 0x200, scoped, tag = 'input window, operand 3, single buffered']
    #allocation5 [shape = 's32[1]{0}', space=sflag, size = 0x4, scoped, tag = 'scoped memory for tpu_custom_call.1']
    %9 = vsyncpa [#allocation3], 0
    %10 = vsyncpa [#allocation5], 0
    loop: start=0, step=1, limit=4
    $region2: #{tpu_custom_call.1} parent=1 // loop_pre_header
      _
    $region3: #{tpu_custom_call.1} parent=1 // loop_header
      %s12 = sphi 0, %s16
      %p13 = scmp.ge.s32.totalorder %s12, 4
      %s22 = sphi 0, %s24
      %s25 = sphi 0, %s22
      %s26 = sphi 0, %s25
      %s42 = sphi 0, %s26
      %s46 = sphi 0, %s46
      %s48 = sphi 0, %s46
      %s49 = sphi 0, %s48
      %s63 = sphi 0, %s49
      %s67 = sphi 0, %s67
      %s69 = sphi 0, %s67
      %s70 = sphi 0, %s69
      %s84 = sphi 0, %s70
      %s88 = sphi 0, %s88
      %s90 = sphi 0, %s88
      %s91 = sphi 0, %s90
      %s105 = sphi 0, %s91
      %s111 = sphi 0, %s113
      %s114 = sphi 0, %s111
      %s115 = sphi 0, %s114
      %s131 = sphi 0, %s115
    $region4: #{tpu_custom_call.1} parent=1 // loop_header_branch
      %15 = sbr.rel (%p13) target = $region8
    $region5: #{tpu_custom_call.1} parent=1 // loop_body
      %s17 = ssub.s32 %s12, 1
      %s18 = ssub.s32 %s12, 2
      %s19 = sadd.s32 %s12, 1
      %s20 = ssub.s32 %s12, %s19
      %p21 = scmp.eq.s32.totalorder %s20, 0
      %s23 = sadd.s32 %s22, 1
      %s24 = scalar_select %p21, %s22, %s23
      %p27 = pneg %p21
      %p28 = scmp.eq.s32.totalorder %s12, 1
      %p29 = por %p27, %p28
      %p30 = scmp.ne.s32.totalorder %s22, %s25
      %p31 = scmp.eq.s32.totalorder %s12, 0
      %p32 = por %p30, %p31
      %p33 = scmp.ne.s32.totalorder %s22, %s25
      %p34 = scmp.eq.s32.totalorder %s17, 1
      %p35 = por %p33, %p34
      %p36 = scmp.ne.s32.totalorder %s25, %s26
      %p37 = scmp.eq.s32.totalorder %s17, 0
      %p38 = por %p36, %p37
      %p39 = scmp.ne.s32.totalorder %s25, %s26
      %p40 = scmp.eq.s32.totalorder %s18, 1
      %p41 = por %p39, %p40
      %p43 = scmp.ne.s32.totalorder %s26, %s42
      %p44 = scmp.eq.s32.totalorder %s18, 0
      %p45 = por %p43, %p44
      %s47 = sadd.s32 %s46, 1
      %p50 = scmp.eq.s32.totalorder %s12, 1
      %p51 = scmp.ne.s32.totalorder %s46, %s48
      %p52 = scmp.eq.s32.totalorder %s12, 0
      %p53 = por %p51, %p52
      %p54 = scmp.ne.s32.totalorder %s46, %s48
      %p55 = scmp.eq.s32.totalorder %s17, 1
      %p56 = por %p54, %p55
      %p57 = scmp.ne.s32.totalorder %s48, %s49
      %p58 = scmp.eq.s32.totalorder %s17, 0
      %p59 = por %p57, %p58
      %p60 = scmp.ne.s32.totalorder %s48, %s49
      %p61 = scmp.eq.s32.totalorder %s18, 1
      %p62 = por %p60, %p61
      %p64 = scmp.ne.s32.totalorder %s49, %s63
      %p65 = scmp.eq.s32.totalorder %s18, 0
      %p66 = por %p64, %p65
      %s68 = sadd.s32 %s67, 1
      %p71 = scmp.eq.s32.totalorder %s12, 1
      %p72 = scmp.ne.s32.totalorder %s67, %s69
      %p73 = scmp.eq.s32.totalorder %s12, 0
      %p74 = por %p72, %p73
      %p75 = scmp.ne.s32.totalorder %s67, %s69
      %p76 = scmp.eq.s32.totalorder %s17, 1
      %p77 = por %p75, %p76
      %p78 = scmp.ne.s32.totalorder %s69, %s70
      %p79 = scmp.eq.s32.totalorder %s17, 0
      %p80 = por %p78, %p79
      %p81 = scmp.ne.s32.totalorder %s69, %s70
      %p82 = scmp.eq.s32.totalorder %s18, 1
      %p83 = por %p81, %p82
      %p85 = scmp.ne.s32.totalorder %s70, %s84
      %p86 = scmp.eq.s32.totalorder %s18, 0
      %p87 = por %p85, %p86
      %s89 = sadd.s32 %s88, 1
      %p92 = scmp.eq.s32.totalorder %s12, 1
      %p93 = scmp.ne.s32.totalorder %s88, %s90
      %p94 = scmp.eq.s32.totalorder %s12, 0
      %p95 = por %p93, %p94
      %p96 = scmp.ne.s32.totalorder %s88, %s90
      %p97 = scmp.eq.s32.totalorder %s17, 1
      %p98 = por %p96, %p97
      %p99 = scmp.ne.s32.totalorder %s90, %s91
      %p100 = scmp.eq.s32.totalorder %s17, 0
      %p101 = por %p99, %p100
      %p102 = scmp.ne.s32.totalorder %s90, %s91
      %p103 = scmp.eq.s32.totalorder %s18, 1
      %p104 = por %p102, %p103
      %p106 = scmp.ne.s32.totalorder %s91, %s105
      %p107 = scmp.eq.s32.totalorder %s18, 0
      %p108 = por %p106, %p107
      %s109 = ssub.s32 %s12, %s19
      %p110 = scmp.eq.s32.totalorder %s109, 0
      %s112 = sadd.s32 %s111, 1
      %s113 = scalar_select %p110, %s111, %s112
      %p116 = pneg %p110
      %p117 = scmp.eq.s32.totalorder %s12, 1
      %p118 = por %p116, %p117
      %p119 = scmp.ne.s32.totalorder %s111, %s114
      %p120 = scmp.eq.s32.totalorder %s12, 0
      %p121 = por %p119, %p120
      %p122 = scmp.ne.s32.totalorder %s111, %s114
      %p123 = scmp.eq.s32.totalorder %s17, 1
      %p124 = por %p122, %p123
      %p125 = scmp.ne.s32.totalorder %s114, %s115
      %p126 = scmp.eq.s32.totalorder %s17, 0
      %p127 = por %p125, %p126
      %p128 = scmp.ne.s32.totalorder %s114, %s115
      %p129 = scmp.eq.s32.totalorder %s18, 1
      %p130 = por %p128, %p129
      %p132 = scmp.ne.s32.totalorder %s115, %s131
      %p133 = scmp.eq.s32.totalorder %s18, 0
      %p134 = por %p132, %p133
      %p135 = scmp.le.s32.totalorder 1, %s12
      %p136 = scmp.lt.s32.totalorder %s12, 3
      %p137 = pnand %p135, %p136
      %p138 = pneg %p137
      // Predicated region
      $region9: #{tpu_custom_call.1} parent=5 // pred_check
        _
      $region10: #{tpu_custom_call.1} parent=5 // pred_check_branch
        %140 = sbr.rel (%p137) target = $region12
      $region11: #{tpu_custom_call.1} parent=5 // pred_region
        %s141 = ssub.s32 %s12, 1
        // Predicated region
        $region13: #{tpu_custom_call.1} parent=11 // pred_check
          %p142 = pneg %p59
        $region14: #{tpu_custom_call.1} parent=11 // pred_check_branch
          %144 = sbr.rel (%p142) target = $region16
        $region15: #{tpu_custom_call.1} parent=11 // pred_region
          _
        $region16: #{tpu_custom_call.1} parent=11 // pred_fallthru
          _
        // Predicated region
        $region17: #{tpu_custom_call.1} parent=11 // pred_check
          %p145 = pneg %p80
        $region18: #{tpu_custom_call.1} parent=11 // pred_check_branch
          %147 = sbr.rel (%p145) target = $region20
        $region19: #{tpu_custom_call.1} parent=11 // pred_region
          %s149 = ssub.s32 64, 64
          %150 = vsyncadd [#allocation3], %s149
          %s152 = sshll.u32 %s2, 4
          %s153 = int_to_ptr.vmem [resolvable:$true] %s152
          %155 = dma.vmem_to_smem %s153, 64, [#allocation2], [#allocation3]
        $region20: #{tpu_custom_call.1} parent=11 // pred_fallthru
          _
        // Predicated region
        $region21: #{tpu_custom_call.1} parent=11 // pred_check
          %p156 = pneg %p101
        $region22: #{tpu_custom_call.1} parent=11 // pred_check_branch
          %158 = sbr.rel (%p156) target = $region24
        $region23: #{tpu_custom_call.1} parent=11 // pred_region
          %s160 = ssub.s32 16, 16
          %161 = vsyncadd [#allocation5], %s160
          %s163 = sshll.u32 %s3, 4
          %s164 = int_to_ptr.vmem [resolvable:$true] %s163
          %166 = dma.vmem_to_smem %s164, 16, [#allocation4], [#allocation5]
        $region24: #{tpu_custom_call.1} parent=11 // pred_fallthru
          _
      $region12: #{tpu_custom_call.1} parent=5 // pred_fallthru
        _
      %p167 = scmp.lt.s32.totalorder %s12, 2
      // Predicated region
      $region25: #{tpu_custom_call.1} parent=5 // pred_check
        %p168 = pneg %p167
      $region26: #{tpu_custom_call.1} parent=5 // pred_check_branch
        %170 = sbr.rel (%p168) target = $region28
      $region27: #{tpu_custom_call.1} parent=5 // pred_region
        // Predicated region
        $region29: #{tpu_custom_call.1} parent=27 // pred_check
          %p171 = pneg %p32
        $region30: #{tpu_custom_call.1} parent=27 // pred_check_branch
          %173 = sbr.rel (%p171) target = $region32
        $region31: #{tpu_custom_call.1} parent=27 // pred_region
          %p174 = scmp.lt.s32.totalorder %s12, 1
          %s175 = scalar_select %p174, %s12, 1
          %s176 = smul.addr %s175, 10
          %s177 = smul.addr %s176, 8
          %s178 = scalar_lea.vmem %s0, %s177
        $region32: #{tpu_custom_call.1} parent=27 // pred_fallthru
          _
      $region28: #{tpu_custom_call.1} parent=5 // pred_fallthru
        _
      %p179 = scmp.le.s32.totalorder 1, %s12
      %p180 = scmp.lt.s32.totalorder %s12, 3
      %p181 = pnand %p179, %p180
      %p182 = pneg %p181
      // Predicated region
      $region33: #{tpu_custom_call.1} parent=5 // pred_check
        _
      $region34: #{tpu_custom_call.1} parent=5 // pred_check_branch
        %184 = sbr.rel (%p181) target = $region36
      $region35: #{tpu_custom_call.1} parent=5 // pred_region
        %s185 = ssub.s32 %s12, 1
        // Predicated region
        $region37: #{tpu_custom_call.1} parent=35 // pred_check
          %p186 = pneg %p80
        $region38: #{tpu_custom_call.1} parent=35 // pred_check_branch
          %188 = sbr.rel (%p186) target = $region40
        $region39: #{tpu_custom_call.1} parent=35 // pred_region
          %189 = dma.done [#allocation3], 64
        $region40: #{tpu_custom_call.1} parent=35 // pred_fallthru
          _
        // Predicated region
        $region41: #{tpu_custom_call.1} parent=35 // pred_check
          %p190 = pneg %p101
        $region42: #{tpu_custom_call.1} parent=35 // pred_check_branch
          %192 = sbr.rel (%p190) target = $region44
        $region43: #{tpu_custom_call.1} parent=35 // pred_region
          %193 = dma.done [#allocation5], 16
        $region44: #{tpu_custom_call.1} parent=35 // pred_fallthru
          _
        %194 = sfence
        %p195 = scmp.lt.s32.totalorder %s17, 1
        %s196 = scalar_select %p195, %s17, 1
        %s197 = smul.addr %s196, 10
        %s198 = smul.addr %s197, 8
        %s199 = scalar_lea.vmem %s0, %s198
        %p200 = pneg %p38
        %p201 = pneg %p35
        %p202 = pneg %p59
        %p203 = pneg %p56
        %p204 = pneg %p80
        %p205 = pneg %p77
        %p206 = pneg %p101
        %p207 = pneg %p98
        %p208 = pneg %p127
        %p209 = pneg %p124
        %p210 = scmp.lt.s32.totalorder %s17, 1
        %s211 = scalar_select %p210, %s17, 1
        %s212 = smul.addr %s211, 2
        %s213 = smul.addr %s212, 4
        %s214 = scalar_lea.vmem %s4, %s213
        %p215 = scmp.lt.s32.totalorder %s17, 1
        %s216 = scalar_select %p215, %s17, 1
        %s217 = smul.addr %s216, 10
        %s218 = smul.addr %s217, 8
        %s219 = scalar_lea.vmem %s0, %s218
        %p220 = scmp.lt.s32.totalorder %s17, 1
        %s221 = scalar_select %p220, %s17, 1
        %s222 = smul.addr %s221, 2
        %s223 = smul.addr %s222, 4
        %s224 = scalar_lea.vmem %s4, %s223
        %v225 = vld [vmem:[%s219] sm:$0xff]
        %v226 = vld [vmem:[%s219 + $0x8] sm:$0xff]
        %v227 = vld [vmem:[%s219 + $0x10] sm:$0xff]
        %v228 = vld [vmem:[%s219 + $0x18] sm:$0xff]
        %v229 = vld [vmem:[%s219 + $0x20] sm:$0xff]
        %v230 = vld [vmem:[%s219 + $0x28] sm:$0xff]
        %v231 = vld [vmem:[%s219 + $0x30] sm:$0xff]
        %v232 = vld [vmem:[%s219 + $0x38] sm:$0xff]
        %v233 = vld [vmem:[%s219 + $0x40] sm:$0x1f]
        %v234 = vld [vmem:[%s219 + $0x48] sm:$0x1f]
        %v235 = vld [vmem:[%s1] sm:$0x1f]
        %vm236 = vcmask 302080
        %v238 = vsel %vm236, %v235, 0
        %vm240 = vcmask 1044480
        %v242 = vsel %vm240, %v233, 0
        %v245 = vsel %vm240, %v234, 0
        %247 = vmatprep.subr.mxu0 0.0
        %248 = vmatpush1.msra.mxu0 0.0
        %249 = vmatprep.subr.mxu0 0.0
        %250 = vmatpush1.msra.mxu0 0.0
        %251 = vmatprep.subr.mxu0 0.0
        %252 = vmatpush1.msra.mxu0 0.0
        %253 = vmatprep.subr.mxu0 0.0
        %254 = vmatpush1.msra.mxu0 0.0
        %255 = vmatprep.subr.mxu0 0.0
        %256 = vmatpush1.msra.mxu0 0.0
        %257 = vmatprep.subr.mxu0 0.0
        %258 = vmatpush1.msra.mxu0 0.0
        %259 = vmatprep.subr.mxu0 0.0
        %260 = vmatpush1.msra.mxu0 0.0
        %261 = vmatprep.subr.mxu0 0.0
        %262 = vmatpush1.msra.mxu0 0.0
        %263 = vmatprep.subr.mxu0 0.0
        %264 = vmatpush1.msra.mxu0 0.0
        %265 = vmatprep.subr.mxu0 0.0
        %266 = vmatpush1.msra.mxu0 0.0
        %267 = vmatprep.subr.mxu0 0.0
        %268 = vmatpush1.msra.mxu0 0.0
        %269 = vmatprep.subr.mxu0 %v245
        %270 = vmatpush1.msra.mxu0 %v242
        %271 = vmatprep.subr.mxu0 %v232
        %272 = vmatpush1.msra.mxu0 %v231
        %273 = vmatprep.subr.mxu0 %v230
        %274 = vmatpush1.msra.mxu0 %v229
        %275 = vmatprep.subr.mxu0 %v228
        %276 = vmatpush1.msra.mxu0 %v227
        %277 = vmatprep.subr.mxu0 %v226
        %278 = vmatpush1.msra.mxu0 %v225
        %279 = vmatprep.subr.mxu0 0.0
        %280 = vmatpush2.msra.mxu0 0.0
        %281 = vmatprep.subr.mxu0 0.0
        %282 = vmatpush2.msra.mxu0 0.0
        %283 = vmatprep.subr.mxu0 0.0
        %284 = vmatpush2.msra.mxu0 0.0
        %285 = vmatprep.subr.mxu0 0.0
        %286 = vmatpush2.msra.mxu0 0.0
        %287 = vmatprep.subr.mxu0 0.0
        %288 = vmatpush2.msra.mxu0 0.0
        %289 = vmatprep.subr.mxu0 0.0
        %290 = vmatpush2.msra.mxu0 0.0
        %291 = vmatprep.subr.mxu0 0.0
        %292 = vmatpush2.msra.mxu0 0.0
        %293 = vmatprep.subr.mxu0 0.0
        %294 = vmatpush2.msra.mxu0 0.0
        %295 = vmatprep.subr.mxu0 0.0
        %296 = vmatpush2.msra.mxu0 0.0
        %297 = vmatprep.subr.mxu0 0.0
        %298 = vmatpush2.msra.mxu0 0.0
        %299 = vmatprep.subr.mxu0 0.0
        %300 = vmatpush2.msra.mxu0 0.0
        %301 = vmatprep.subr.mxu0 0.0
        %302 = vmatpush2.msra.mxu0 0.0
        %303 = vmatprep.subr.mxu0 0.0
        %304 = vmatpush2.msra.mxu0 0.0
        %305 = vmatprep.subr.mxu0 0.0
        %306 = vmatpush2.msra.mxu0 0.0
        %307 = vmatprep.subr.mxu0 0.0
        %308 = vmatpush2.msra.mxu0 0.0
        %309 = vmatprep.subr.mxu0 0.0
        %310 = vmatpush2.msra.mxu0 0.0
        %311 = vmatprep.mubr.f32.mxu0 0.0
        %312 = vmatmul.mubr.f32.gmra.mxu0 %v238
        %v313 = vpop.f32.mrf.mxu0
        %v314 = vadd.f32 0.0, %v313
        %v315 = vpop.f32.mrf.mxu0
        %v316 = vadd.f32 0.0, %v315
        %317 = vdwg.mxu0
        %v318 = vtanh.pop %v314
        %v319 = vtanh.pop %v316
        %s320 = sld [smem:[#allocation2]]
        %v321 = vstv %s320
        %v322 = vmul.f32 %v321, %v318
        %v323 = vmul.f32 %v321, %v319
        %s324 = sld [smem:[#allocation2 + $0x80]]
        %v325 = vstv %s324
        %v326 = vmul.f32 %v325, %v318
        %v327 = vmul.f32 %v325, %v319
        %v330 = vrot.slane %v326, 1
        %v331 = vrot.slane %v327, 1
        %v334 = vadd.f32 %v322, %v330
        %v335 = vadd.f32 %v323, %v331
        %s336 = sld [smem:[#allocation2 + $0x100]]
        %v337 = vstv %s336
        %v338 = vmul.f32 %v337, %v318
        %v339 = vmul.f32 %v337, %v319
        %v342 = vrot.slane %v338, 2
        %v343 = vrot.slane %v339, 2
        %v346 = vadd.f32 %v334, %v342
        %v347 = vadd.f32 %v335, %v343
        %s348 = sld [smem:[#allocation2 + $0x180]]
        %v349 = vstv %s348
        %v350 = vmul.f32 %v349, %v318
        %v351 = vmul.f32 %v349, %v319
        %v354 = vrot.slane %v350, 3
        %v355 = vrot.slane %v351, 3
        %v358 = vadd.f32 %v346, %v354
        %v359 = vadd.f32 %v347, %v355
        %s360 = sld [smem:[#allocation4]]
        %v361 = vstv %s360
        %v362 = vadd.f32 %v358, %v361
        %v363 = vadd.f32 %v359, %v361
        %s364 = sld [smem:[#allocation2 + $0x1]]
        %v365 = vstv %s364
        %v366 = vmul.f32 %v365, %v318
        %v367 = vmul.f32 %v365, %v319
        %s368 = sld [smem:[#allocation2 + $0x81]]
        %v369 = vstv %s368
        %v370 = vmul.f32 %v369, %v318
        %v371 = vmul.f32 %v369, %v319
        %v374 = vrot.slane %v370, 1
        %v375 = vrot.slane %v371, 1
        %v378 = vadd.f32 %v366, %v374
        %v379 = vadd.f32 %v367, %v375
        %s380 = sld [smem:[#allocation2 + $0x101]]
        %v381 = vstv %s380
        %v382 = vmul.f32 %v381, %v318
        %v383 = vmul.f32 %v381, %v319
        %v386 = vrot.slane %v382, 2
        %v387 = vrot.slane %v383, 2
        %v390 = vadd.f32 %v378, %v386
        %v391 = vadd.f32 %v379, %v387
        %s392 = sld [smem:[#allocation2 + $0x181]]
        %v393 = vstv %s392
        %v394 = vmul.f32 %v393, %v318
        %v395 = vmul.f32 %v393, %v319
        %v398 = vrot.slane %v394, 3
        %v399 = vrot.slane %v395, 3
        %v402 = vadd.f32 %v390, %v398
        %v403 = vadd.f32 %v391, %v399
        %s404 = sld [smem:[#allocation4 + $0x1]]
        %v405 = vstv %s404
        %v406 = vadd.f32 %v402, %v405
        %v407 = vadd.f32 %v403, %v405
        %s408 = sld [smem:[#allocation2 + $0x2]]
        %v409 = vstv %s408
        %v410 = vmul.f32 %v409, %v318
        %v411 = vmul.f32 %v409, %v319
        %s412 = sld [smem:[#allocation2 + $0x82]]
        %v413 = vstv %s412
        %v414 = vmul.f32 %v413, %v318
        %v415 = vmul.f32 %v413, %v319
        %v418 = vrot.slane %v414, 1
        %v419 = vrot.slane %v415, 1
        %v422 = vadd.f32 %v410, %v418
        %v423 = vadd.f32 %v411, %v419
        %s424 = sld [smem:[#allocation2 + $0x102]]
        %v425 = vstv %s424
        %v426 = vmul.f32 %v425, %v318
        %v427 = vmul.f32 %v425, %v319
        %v430 = vrot.slane %v426, 2
        %v431 = vrot.slane %v427, 2
        %v434 = vadd.f32 %v422, %v430
        %v435 = vadd.f32 %v423, %v431
        %s436 = sld [smem:[#allocation2 + $0x182]]
        %v437 = vstv %s436
        %v438 = vmul.f32 %v437, %v318
        %v439 = vmul.f32 %v437, %v319
        %v442 = vrot.slane %v438, 3
        %v443 = vrot.slane %v439, 3
        %v446 = vadd.f32 %v434, %v442
        %v447 = vadd.f32 %v435, %v443
        %s448 = sld [smem:[#allocation4 + $0x2]]
        %v449 = vstv %s448
        %v450 = vadd.f32 %v446, %v449
        %v451 = vadd.f32 %v447, %v449
        %v454 = vrot.slane %v406, 7
        %v455 = vrot.slane %v407, 7
        %v460 = vrot.slane %v450, 6
        %v461 = vrot.slane %v451, 6
        %vm464 = vcmask 1040384
        %v465 = vsel %vm464, %v362, %v454
        %v466 = vsel %vm464, %v363, %v455
        %vm467 = vcmask 1041408
        %v468 = vsel %vm467, %v465, %v460
        %v469 = vsel %vm467, %v466, %v461
        %v470 = vlaneseq
        %v471 = vshrl.u32 %v470, 7
        %v472 = vsub.s32 4, %v471
        %v473 = vrot.slane %v314, %v472
        %v474 = vlaneseq
        %v475 = vshrl.u32 %v474, 7
        %v476 = vsub.s32 4, %v475
        %v477 = vrot.slane %v316, %v476
        %v478 = vmul.f32 %v468, %v473
        %v479 = vmul.f32 %v469, %v477
        %v482 = vcombine.low %v478, %v479
        %vm484 = vcmask 1042432
        %vm485 = vcmask 555012
        %vm486 = vmor %vm485, %vm484
        %487 = vst.msk [vmem:[%s224] sm:$0x77] %vm486, %v482
        %p488 = scmp.lt.s32.totalorder %s17, 1
        %s489 = scalar_select %p488, %s17, 1
        %s490 = smul.addr %s489, 2
        %s491 = smul.addr %s490, 4
        %s492 = scalar_lea.vmem %s4, %s491
        // Predicated region
        $region45: #{tpu_custom_call.1} parent=35 // pred_check
          %p493 = pneg %p124
        $region46: #{tpu_custom_call.1} parent=35 // pred_check_branch
          %495 = sbr.rel (%p493) target = $region48
        $region47: #{tpu_custom_call.1} parent=35 // pred_region
          _
        $region48: #{tpu_custom_call.1} parent=35 // pred_fallthru
          _
      $region36: #{tpu_custom_call.1} parent=5 // pred_fallthru
        _
      %p496 = scmp.le.s32.totalorder 2, %s12
      // Predicated region
      $region49: #{tpu_custom_call.1} parent=5 // pred_check
        %p497 = pneg %p496
      $region50: #{tpu_custom_call.1} parent=5 // pred_check_branch
        %499 = sbr.rel (%p497) target = $region52
      $region51: #{tpu_custom_call.1} parent=5 // pred_region
        %s500 = ssub.s32 %s12, 2
        // Predicated region
        $region53: #{tpu_custom_call.1} parent=51 // pred_check
          %p501 = pneg %p130
        $region54: #{tpu_custom_call.1} parent=51 // pred_check_branch
          %503 = sbr.rel (%p501) target = $region56
        $region55: #{tpu_custom_call.1} parent=51 // pred_region
          %p504 = scmp.lt.s32.totalorder %s18, 1
          %s505 = scalar_select %p504, %s18, 1
          %s506 = smul.addr %s505, 2
          %s507 = smul.addr %s506, 4
          %s508 = scalar_lea.vmem %s4, %s507
        $region56: #{tpu_custom_call.1} parent=51 // pred_fallthru
          _
      $region52: #{tpu_custom_call.1} parent=5 // pred_fallthru
        _
    $region6: #{tpu_custom_call.1} parent=1 // loop_footer
      %s16 = sadd.s32 1, %s12
    $region7: #{tpu_custom_call.1} parent=1 // loop_footer_branch
      %11 = sbr.rel target = $region3
    $region8: #{tpu_custom_call.1} parent=1 // loop_exit
      _
    %509 = vsyncpa [#allocation3], 1
    %s510 = scalar_lea.sflag [#allocation3], 1
    %511 = vsyncpa %s510, 1
    %512 = vsyncpa [#allocation5], 1

</llo_original>
